<compile_context>
chip_gen: v5e
topology: v5e:2x2
jax: 0.10.0
libtpu: 0.0.40
codegen_flags: <defaults>
</compile_context>

<pallas_src>
import functools

import jax
import jax.numpy as jnp
from jax.experimental import pallas as pl
from jax.experimental.pallas import tpu as pltpu

LANES = 128
SUBLANES = 8
BLOCK_ELEMS = SUBLANES * LANES  # one native f32 (8,128) tile = 1024 elements
MAX_TILE_ROWS = 2048            # 1 MiB f32 per input per grid step


def _dice_partials_kernel(x_ref, t_ref, o_ref, acc_inter_ref, acc_sum_ref, *,
                          n_valid, needs_mask, tile_rows):
    """Grid axis 0 streams (tile_rows, 128) tiles of the flattened slab.

    acc_inter_ref (8,128) accumulates sigmoid(x) * t partials.
    acc_sum_ref   (8,128) accumulates sigmoid(x) + t partials.
    Finalize reduces both to scalars: o_ref = [intersection, sum_p + sum_t].
    """
    i = pl.program_id(0)
    last = pl.num_programs(0) - 1
    folds = tile_rows // SUBLANES

    @pl.when(i == 0)
    def _init():
        acc_inter_ref[...] = jnp.zeros_like(acc_inter_ref)
        acc_sum_ref[...] = jnp.zeros_like(acc_sum_ref)

    # Cast on load; inputs stream from HBM at their native width.
    x = x_ref[...].astype(jnp.float32)
    t = t_ref[...].astype(jnp.float32)
    # EUP-friendly sigmoid: one tanh (EUP slot) + cheap VPU fixup.
    p = 0.5 * jnp.tanh(0.5 * x) + 0.5

    def _accumulate(p_v, t_v):
        # Fold (tile_rows,128) -> (8,128): reshape splits the leading dim only
        # (no relayout) and the leading-axis sum is pure vreg-to-vreg VPU adds.
        prod = (p_v * t_v).reshape(folds, SUBLANES, LANES)
        tot = (p_v + t_v).reshape(folds, SUBLANES, LANES)
        acc_inter_ref[...] += jnp.sum(prod, axis=0)
        acc_sum_ref[...] += jnp.sum(tot, axis=0)

    if needs_mask:
        # Pad / partial-last-block garbage only exists in the final grid step:
        # pay for the iota + compare + select there only.
        @pl.when(i != last)
        def _bulk():
            _accumulate(p, t)

        @pl.when(i == last)
        def _masked_tail():
            row = jax.lax.broadcasted_iota(jnp.int32, (tile_rows, LANES), 0)
            col = jax.lax.broadcasted_iota(jnp.int32, (tile_rows, LANES), 1)
            flat = (i * tile_rows + row) * LANES + col
            mask = flat < n_valid
            # Keep `where` (select), not multiply: garbage bits may be NaN/Inf.
            _accumulate(jnp.where(mask, p, 0.0), jnp.where(mask, t, 0.0))
    else:
        _accumulate(p, t)

    @pl.when(i == last)
    def _finalize():
        o_ref[0, 0] = jnp.sum(acc_inter_ref[...])
        o_ref[0, 1] = jnp.sum(acc_sum_ref[...])


def dice_loss(inputs, targets, smooth=1.0):
    """Pallas-backed Dice loss. `inputs` are logits, `targets` binary masks.

    Both operands stream in their native dtype; prefer bf16 logits and
    int8/bool masks to cut HBM traffic (the kernel casts to f32 on load).
    """
    assert inputs.shape == targets.shape

    x = jnp.reshape(inputs, (-1,))
    t = jnp.reshape(targets, (-1,))
    if t.dtype == jnp.bool_:
        t = t.astype(jnp.int8)  # stream masks as 1-byte ints
    n = x.shape[0]

    # Main slab: the largest prefix that fills whole (8,128) tiles, so the
    # flat->(rows,128) reshape is a free bitcast and the in-kernel fold-by-8 is
    # exact. The (<1024-element) remainder is reduced wrapper-side below.
    n_main = (n // BLOCK_ELEMS) * BLOCK_ELEMS
    needs_mask = False
    n_valid = n_main
    rem = 0
    if n_main == 0:
        # Tiny input (< one tile): pad up to one tile (negligible copy) and
        # mask inside the kernel against the true element count.
        pad = BLOCK_ELEMS - n
        x_main = jnp.pad(x, (0, pad))
        t_main = jnp.pad(t, (0, pad))
        n_main, n_valid, needs_mask = BLOCK_ELEMS, n, True
    elif n_main < n:
        # TODO(synk): for very large ragged inputs, a manual-DMA (pl.ANY) path
        # over the flat array would avoid this prefix-slice copy.
        x_main = x[:n_main]
        t_main = t[:n_main]
        rem = n - n_main
    else:
        x_main, t_main = x, t

    rows = n_main // LANES                 # always a multiple of 8
    tile_rows = min(MAX_TILE_ROWS, rows)   # multiple of 8 (and of 32 when large)
    num_steps = pl.cdiv(rows, tile_rows)
    # In-kernel tail mask is also needed when the last grid block is partial.
    needs_mask = needs_mask or (num_steps * tile_rows != rows)

    x2 = x_main.reshape(rows, LANES)
    t2 = t_main.reshape(rows, LANES)

    partials = pl.pallas_call(
        functools.partial(
            _dice_partials_kernel,
            n_valid=n_valid,
            needs_mask=needs_mask,
            tile_rows=tile_rows,
        ),
        out_shape=jax.ShapeDtypeStruct((1, 2), jnp.float32),
        grid_spec=pltpu.PrefetchScalarGridSpec(
            num_scalar_prefetch=0,
            grid=(num_steps,),
            in_specs=[
                pl.BlockSpec((tile_rows, LANES), lambda i: (i, 0)),
                pl.BlockSpec((tile_rows, LANES), lambda i: (i, 0)),
            ],
            out_specs=pl.BlockSpec(
                (1, 2), lambda i: (0, 0), memory_space=pltpu.MemorySpace.SMEM
            ),
            scratch_shapes=[
                pltpu.VMEM((SUBLANES, LANES), jnp.float32),  # sum(p*t) partials
                pltpu.VMEM((SUBLANES, LANES), jnp.float32),  # sum(p)+sum(t)
            ],
        ),
        compiler_params=pltpu.CompilerParams(
            dimension_semantics=("arbitrary",),  # sequential reduction axis
        ),
    )(x2, t2)

    inter = partials[0, 0]
    total = partials[0, 1]

    if rem:
        # Sub-tile remainder: a handful of elements, reduced with plain jnp.
        tail_p = jax.nn.sigmoid(x[n_main:].astype(jnp.float32))
        tail_t = t[n_main:].astype(jnp.float32)
        inter = inter + jnp.sum(tail_p * tail_t)
        total = total + jnp.sum(tail_p) + jnp.sum(tail_t)

    dice = (2.0 * inter + smooth) / (total + smooth)
    return 1.0 - dice


def dice_loss_ref(inputs, targets, smooth=1.0):
    p = jax.nn.sigmoid(inputs.astype(jnp.float32)).reshape(-1)
    t = targets.astype(jnp.float32).reshape(-1)
    inter = jnp.sum(p * t)
    dice = (2.0 * inter + smooth) / (jnp.sum(p) + jnp.sum(t) + smooth)
    return 1.0 - dice


if __name__ == "__main__":
    key = jax.random.PRNGKey(0)
    k1, k2, k3, k4, k5, k6 = jax.random.split(key, 6)

    # NCHW logits and binary masks (batch=2, channels=4, spatial=16x16).
    x = jax.random.normal(k1, (2, 4, 16, 16), dtype=jnp.float32)
    y = (jax.random.uniform(k2, (2, 4, 16, 16)) > 0.5).astype(jnp.float32)
    loss = jax.block_until_ready(dice_loss(x, y, smooth=1.0))
    ref = jax.block_until_ready(dice_loss_ref(x, y, smooth=1.0))
    assert jnp.allclose(loss, ref, atol=1e-5, rtol=1e-5), (loss, ref)

    # Ragged element count (exercises the wrapper-side sub-tile remainder).
    x2 = jax.random.normal(k3, (3, 5, 7, 11), dtype=jnp.float32)
    y2 = (jax.random.uniform(k4, (3, 5, 7, 11)) > 0.5).astype(jnp.float32)
    loss2 = jax.block_until_ready(dice_loss(x2, y2, smooth=1.0))
    ref2 = jax.block_until_ready(dice_loss_ref(x2, y2, smooth=1.0))
    assert jnp.allclose(loss2, ref2, atol=1e-5, rtol=1e-5), (loss2, ref2)

    # Tiny input (< one (8,128) tile) exercises the in-kernel mask path.
    x3 = jax.random.normal(k5, (1, 1, 8, 24), dtype=jnp.float32)
    y3 = (jax.random.uniform(k6, (1, 1, 8, 24)) > 0.5).astype(jnp.float32)
    loss3 = jax.block_until_ready(dice_loss(x3, y3, smooth=1.0))
    ref3 = jax.block_until_ready(dice_loss_ref(x3, y3, smooth=1.0))
    assert jnp.allclose(loss3, ref3, atol=1e-5, rtol=1e-5), (loss3, ref3)

    print("KERNEL_OK")
</pallas_src>

<mosaic_0001>
module attributes {stable_mosaic.version = 11 : i64} {
  func.func @_dice_partials_kernel(%arg0: i32, %arg1: memref<16x128xf32, #tpu.memory_space<vmem>>, %arg2: memref<16x128xf32, #tpu.memory_space<vmem>>, %arg3: memref<1x2xf32, #tpu.memory_space<smem>>, %arg4: memref<8x128xf32, #tpu.memory_space<vmem>>, %arg5: memref<8x128xf32, #tpu.memory_space<vmem>>) attributes {dimension_semantics = [#tpu.dimension_semantics<arbitrary>], iteration_bounds = array<i64: 1>, scalar_prefetch = 0 : i64, scratch_operands = 2 : i64, tpu.core_type = #tpu.core_type<tc>, window_params = [{transform_indices = @transform_0, window_bounds = array<i64: 16, 128>}, {transform_indices = @transform_1, window_bounds = array<i64: 16, 128>}, {transform_indices = @transform_2, window_bounds = array<i64: 1, 2>}]} {
    %c0_i32 = arith.constant 0 : i32
    %0 = arith.cmpi eq, %arg0, %c0_i32 : i32
    %1 = arith.extui %0 : i1 to i32
    %c0_i32_0 = arith.constant 0 : i32
    %2 = arith.cmpi ne, %1, %c0_i32_0 : i32
    scf.if %2 {
      %cst_18 = arith.constant 0.000000e+00 : f32
      %27 = vector.broadcast %cst_18 : f32 to vector<8x128xf32>
      %c0_19 = arith.constant 0 : index
      %c0_20 = arith.constant 0 : index
      %28 = vector.load %arg4[%c0_19, %c0_20] : memref<8x128xf32, #tpu.memory_space<vmem>>, vector<8x128xf32>
      tpu.vector_store %arg4[%c0_19, %c0_20], %27 {strides = array<i32>} : memref<8x128xf32, #tpu.memory_space<vmem>>, vector<8x128xf32>,
      %cst_21 = arith.constant 0.000000e+00 : f32
      %29 = vector.broadcast %cst_21 : f32 to vector<8x128xf32>
      %c0_22 = arith.constant 0 : index
      %c0_23 = arith.constant 0 : index
      %30 = vector.load %arg5[%c0_22, %c0_23] : memref<8x128xf32, #tpu.memory_space<vmem>>, vector<8x128xf32>
      tpu.vector_store %arg5[%c0_22, %c0_23], %29 {strides = array<i32>} : memref<8x128xf32, #tpu.memory_space<vmem>>, vector<8x128xf32>,
    } else {
    }
    %c0 = arith.constant 0 : index
    %c0_1 = arith.constant 0 : index
    %3 = vector.load %arg1[%c0, %c0_1] : memref<16x128xf32, #tpu.memory_space<vmem>>, vector<16x128xf32>
    %c0_2 = arith.constant 0 : index
    %c0_3 = arith.constant 0 : index
    %4 = vector.load %arg2[%c0_2, %c0_3] : memref<16x128xf32, #tpu.memory_space<vmem>>, vector<16x128xf32>
    %cst = arith.constant 5.000000e-01 : f32
    %5 = vector.broadcast %cst : f32 to vector<16x128xf32>
    %6 = arith.mulf %5, %3 : vector<16x128xf32>
    %7 = math.tanh %6 : vector<16x128xf32>
    %cst_4 = arith.constant 5.000000e-01 : f32
    %8 = vector.broadcast %cst_4 : f32 to vector<16x128xf32>
    %9 = arith.mulf %8, %7 : vector<16x128xf32>
    %cst_5 = arith.constant 5.000000e-01 : f32
    %10 = vector.broadcast %cst_5 : f32 to vector<16x128xf32>
    %11 = arith.addf %9, %10 : vector<16x128xf32>
    %12 = arith.mulf %11, %4 : vector<16x128xf32>
    %13 = vector.shape_cast %12 : vector<16x128xf32> to vector<2x8x128xf32>
    %14 = arith.addf %11, %4 : vector<16x128xf32>
    %15 = vector.shape_cast %14 : vector<16x128xf32> to vector<2x8x128xf32>
    %c0_6 = arith.constant 0 : index
    %c0_7 = arith.constant 0 : index
    %16 = vector.load %arg4[%c0_6, %c0_7] : memref<8x128xf32, #tpu.memory_space<vmem>>, vector<8x128xf32>
    %cst_8 = arith.constant dense<0.000000e+00> : vector<8x128xf32>
    %17 = vector.multi_reduction <add>, %13, %cst_8 [0] : vector<2x8x128xf32> to vector<8x128xf32>
    %18 = arith.addf %16, %17 : vector<8x128xf32>
    %c0_9 = arith.constant 0 : index
    %c0_10 = arith.constant 0 : index
    %19 = vector.load %arg4[%c0_9, %c0_10] : memref<8x128xf32, #tpu.memory_space<vmem>>, vector<8x128xf32>
    tpu.vector_store %arg4[%c0_9, %c0_10], %18 {strides = array<i32>} : memref<8x128xf32, #tpu.memory_space<vmem>>, vector<8x128xf32>,
    %c0_11 = arith.constant 0 : index
    %c0_12 = arith.constant 0 : index
    %20 = vector.load %arg5[%c0_11, %c0_12] : memref<8x128xf32, #tpu.memory_space<vmem>>, vector<8x128xf32>
    %cst_13 = arith.constant dense<0.000000e+00> : vector<8x128xf32>
    %21 = vector.multi_reduction <add>, %15, %cst_13 [0] : vector<2x8x128xf32> to vector<8x128xf32>
    %22 = arith.addf %20, %21 : vector<8x128xf32>
    %c0_14 = arith.constant 0 : index
    %c0_15 = arith.constant 0 : index
    %23 = vector.load %arg5[%c0_14, %c0_15] : memref<8x128xf32, #tpu.memory_space<vmem>>, vector<8x128xf32>
    tpu.vector_store %arg5[%c0_14, %c0_15], %22 {strides = array<i32>} : memref<8x128xf32, #tpu.memory_space<vmem>>, vector<8x128xf32>,
    %c0_i32_16 = arith.constant 0 : i32
    %24 = arith.cmpi eq, %arg0, %c0_i32_16 : i32
    %25 = arith.extui %24 : i1 to i32
    %c0_i32_17 = arith.constant 0 : i32
    %26 = arith.cmpi ne, %25, %c0_i32_17 : i32
    scf.if %26 {
      %c0_18 = arith.constant 0 : index
      %c0_19 = arith.constant 0 : index
      %27 = vector.load %arg4[%c0_18, %c0_19] : memref<8x128xf32, #tpu.memory_space<vmem>>, vector<8x128xf32>
      %28 = vector.shape_cast %27 : vector<8x128xf32> to vector<1x8x128xf32>
      %cst_20 = arith.constant dense<0.000000e+00> : vector<1xf32>
      %29 = vector.multi_reduction <add>, %28, %cst_20 [1, 2] : vector<1x8x128xf32> to vector<1xf32>
      %30 = vector.shape_cast %29 : vector<1xf32> to vector<1x1x1xf32>
      %31 = vector.extract %30[0, 0, 0] : f32 from vector<1x1x1xf32>
      %c0_21 = arith.constant 0 : index
      %c0_22 = arith.constant 0 : index
      %32 = memref.load %arg3[%c0_21, %c0_22] : memref<1x2xf32, #tpu.memory_space<smem>>
      memref.store %31, %arg3[%c0_21, %c0_22] : memref<1x2xf32, #tpu.memory_space<smem>>
      %c0_23 = arith.constant 0 : index
      %c0_24 = arith.constant 0 : index
      %33 = vector.load %arg5[%c0_23, %c0_24] : memref<8x128xf32, #tpu.memory_space<vmem>>, vector<8x128xf32>
      %34 = vector.shape_cast %33 : vector<8x128xf32> to vector<1x8x128xf32>
      %cst_25 = arith.constant dense<0.000000e+00> : vector<1xf32>
      %35 = vector.multi_reduction <add>, %34, %cst_25 [1, 2] : vector<1x8x128xf32> to vector<1xf32>
      %36 = vector.shape_cast %35 : vector<1xf32> to vector<1x1x1xf32>
      %37 = vector.extract %36[0, 0, 0] : f32 from vector<1x1x1xf32>
      %c0_26 = arith.constant 0 : index
      %c1 = arith.constant 1 : index
      %38 = memref.load %arg3[%c0_26, %c1] : memref<1x2xf32, #tpu.memory_space<smem>>
      memref.store %37, %arg3[%c0_26, %c1] : memref<1x2xf32, #tpu.memory_space<smem>>
    } else {
    }
    return
  }
  func.func @transform_0(%arg0: i32) -> (i32, i32) {
    %c0_i32 = arith.constant 0 : i32
    %c0_i32_0 = arith.constant 0 : i32
    return %arg0, %c0_i32 : i32, i32
  }
  func.func @transform_1(%arg0: i32) -> (i32, i32) {
    %c0_i32 = arith.constant 0 : i32
    %c0_i32_0 = arith.constant 0 : i32
    return %arg0, %c0_i32 : i32, i32
  }
  func.func @transform_2(%arg0: i32) -> (i32, i32) {
    %c0_i32 = arith.constant 0 : i32
    %c0_i32_0 = arith.constant 0 : i32
    %c0_i32_1 = arith.constant 0 : i32
    return %c0_i32, %c0_i32_0 : i32, i32
  }
}

</mosaic_0001>

<llo_original>
// kernel: tpu_custom_call.1
$region0: #{tpu_custom_call.1}
  #allocation0 [shape = 'u32[]', space=smem, size = 0x4, offset = 0x4, fixed_abs, tag = 'smem constant byte address 0x4 - core index']
  #allocation1 [shape = 'u32[72,128]{1,0:T(1,128)}', space=vmem, size = 0x9000, scoped, tag = 'internal scratch']
  #allocation2 [shape = 'f32[8,128]{1,0:T(8,128)}', space=vmem, size = 0x1000, scoped, tag = 'scratch operand']
  #allocation3 [shape = 'f32[8,128]{1,0:T(8,128)}', space=vmem, size = 0x1000, scoped, tag = 'scratch operand']
  %s0 = inlined_call_operand.hbm [shape: f32[16,128], index: 0, kind: input, shape index: {}]
  %s1 = inlined_call_operand.hbm [shape: f32[16,128], index: 1, kind: input, shape index: {}]
  %s2 = inlined_call_operand.hbm [shape: f32[1,2], index: 2, kind: output, shape index: {}]
  %s3 = sld [smem:[#allocation0]]
  $region34: #{tpu_custom_call.1} parent=0
    _
  %s5 = ssub.s32 1, %s3
  %s6 = scalar_select 0, %s5, %s3
  $region1: #{tpu_custom_call.1} parent=0
    #allocation4 [shape = 'u8[8192]{0}', space=vmem, size = 0x2000, scoped, tag = 'input window, operand 0, single buffered']
    #allocation5 [shape = 's32[1]{0}', space=sflag, size = 0x4, scoped, tag = 'scoped memory for tpu_custom_call.1']
    #allocation6 [shape = 's32[1]{0}', space=sflag, size = 0x4, scoped, tag = 'scoped memory for tpu_custom_call.1']
    #allocation7 [shape = 'u8[8192]{0}', space=vmem, size = 0x2000, scoped, tag = 'input window, operand 1, single buffered']
    #allocation8 [shape = 's32[1]{0}', space=sflag, size = 0x4, scoped, tag = 'scoped memory for tpu_custom_call.1']
    #allocation9 [shape = 'u8[512]{0}', space=smem, size = 0x200, scoped, tag = 'output window, operand 0, single buffered']
    %7 = vsyncpa [#allocation5], 0
    %8 = vsyncpa [#allocation8], 0
    %9 = vsyncpa [#allocation6], 0
    // Predicated region
    $region2: #{tpu_custom_call.1} parent=1 // pred_check
      _
    $region3: #{tpu_custom_call.1} parent=1 // pred_check_branch
      %11 = sbr.rel (0) target = $region5
    $region4: #{tpu_custom_call.1} parent=1 // pred_region
      %13 = vsyncadd [#allocation5], 0
      %s14 = sshll.u32 %s0, 4
      %s15 = int_to_ptr.hbm [resolvable:$true] %s14
      %s16 = sshll.u32 [#allocation4], 4
      %s17 = int_to_ptr.vmem [resolvable:$true] %s16
      %22 = dma.hbm_to_vmem [thread:$0]  %s15, 256, %s17, [#allocation5], 128, 128, 8
    $region5: #{tpu_custom_call.1} parent=1 // pred_fallthru
      _
    // Predicated region
    $region6: #{tpu_custom_call.1} parent=1 // pred_check
      _
    $region7: #{tpu_custom_call.1} parent=1 // pred_check_branch
      %24 = sbr.rel (0) target = $region9
    $region8: #{tpu_custom_call.1} parent=1 // pred_region
      %26 = vsyncadd [#allocation8], 0
      %s27 = sshll.u32 %s1, 4
      %s28 = int_to_ptr.hbm [resolvable:$true] %s27
      %s29 = sshll.u32 [#allocation7], 4
      %s30 = int_to_ptr.vmem [resolvable:$true] %s29
      %35 = dma.hbm_to_vmem [thread:$0]  %s28, 256, %s30, [#allocation8], 128, 128, 8
    $region9: #{tpu_custom_call.1} parent=1 // pred_fallthru
      _
    // Predicated region
    $region10: #{tpu_custom_call.1} parent=1 // pred_check
      _
    $region11: #{tpu_custom_call.1} parent=1 // pred_check_branch
      %37 = sbr.rel (0) target = $region13
    $region12: #{tpu_custom_call.1} parent=1 // pred_region
      %39 = dma.done [#allocation5], 256
    $region13: #{tpu_custom_call.1} parent=1 // pred_fallthru
      _
    // Predicated region
    $region14: #{tpu_custom_call.1} parent=1 // pred_check
      _
    $region15: #{tpu_custom_call.1} parent=1 // pred_check_branch
      %41 = sbr.rel (0) target = $region17
    $region16: #{tpu_custom_call.1} parent=1 // pred_region
      %43 = dma.done [#allocation8], 256
    $region17: #{tpu_custom_call.1} parent=1 // pred_fallthru
      _
    %p44 = scmp.eq.s32.totalorder 0, 0
    // Predicated region
    $region18: #{tpu_custom_call.1} parent=1 // pred_check
      %p45 = pneg %p44
    $region19: #{tpu_custom_call.1} parent=1 // pred_check_branch
      %47 = sbr.rel (%p45) target = $region21
    $region20: #{tpu_custom_call.1} parent=1 // pred_region
      %48 = vst [vmem:[#allocation2] sm:$0xff] 0.0
      %49 = vst [vmem:[#allocation3] sm:$0xff] 0.0
    $region21: #{tpu_custom_call.1} parent=1 // pred_fallthru
      _
    %v50 = vld [vmem:[#allocation4] sm:$0xff]
    %v51 = vld [vmem:[#allocation4 + $0x8] sm:$0xff]
    %v52 = vld [vmem:[#allocation7] sm:$0xff]
    %v53 = vld [vmem:[#allocation7 + $0x8] sm:$0xff]
    %v54 = vmul.f32 %v50, 0.5
    %v55 = vmul.f32 %v51, 0.5
    %v56 = vtanh.pop %v54
    %v57 = vtanh.pop %v55
    %v58 = vmul.f32 %v56, 0.5
    %v59 = vmul.f32 %v57, 0.5
    %v60 = vadd.f32 %v58, 0.5
    %v61 = vadd.f32 %v59, 0.5
    %v62 = vmul.f32 %v60, %v52
    %v63 = vmul.f32 %v61, %v53
    %v64 = vadd.f32 %v60, %v52
    %v65 = vadd.f32 %v61, %v53
    %v66 = vld [vmem:[#allocation2] sm:$0xff]
    %v67 = vadd.f32 %v62, %v63
    %v68 = vadd.f32 %v66, %v67
    %69 = vst [vmem:[#allocation2] sm:$0xff] %v68
    %v70 = vld [vmem:[#allocation3] sm:$0xff]
    %v71 = vadd.f32 %v64, %v65
    %v72 = vadd.f32 %v70, %v71
    %73 = vst [vmem:[#allocation3] sm:$0xff] %v72
    // Predicated region
    $region22: #{tpu_custom_call.1} parent=1 // pred_check
      %p74 = pneg %p44
    $region23: #{tpu_custom_call.1} parent=1 // pred_check_branch
      %76 = sbr.rel (%p74) target = $region25
    $region24: #{tpu_custom_call.1} parent=1 // pred_region
      %v77 = vld [vmem:[#allocation2] sm:$0xff]
      %78 = vadd.xlane.f32.xlu0 %v77
      %v79 = vpop.xlane.xlu0 %78
      %v80 = vrot.slane %v79, 4
      %v81 = vadd.f32 %v79, %v80
      %v82 = vrot.slane %v81, 2
      %v83 = vadd.f32 %v81, %v82
      %v84 = vrot.slane %v83, 1
      %v85 = vadd.f32 %v83, %v84
      %s86 = vtos %v85
      %s87 = scalar_lea.smem [#allocation9], 0
      %88 = sst [smem:[%s87]] %s86
      %v89 = vld [vmem:[#allocation3] sm:$0xff]
      %90 = vadd.xlane.f32.xlu0 %v89
      %v91 = vpop.xlane.xlu0 %90
      %v92 = vrot.slane %v91, 4
      %v93 = vadd.f32 %v91, %v92
      %v94 = vrot.slane %v93, 2
      %v95 = vadd.f32 %v93, %v94
      %v96 = vrot.slane %v95, 1
      %v97 = vadd.f32 %v95, %v96
      %s98 = vtos %v97
      %s99 = scalar_lea.smem [#allocation9], 1
      %100 = sst [smem:[%s99]] %s98
    $region25: #{tpu_custom_call.1} parent=1 // pred_fallthru
      _
    // Predicated region
    $region26: #{tpu_custom_call.1} parent=1 // pred_check
      _
    $region27: #{tpu_custom_call.1} parent=1 // pred_check_branch
      %102 = sbr.rel (0) target = $region29
    $region28: #{tpu_custom_call.1} parent=1 // pred_region
      %104 = vsyncadd [#allocation6], 0
      %s106 = sshll.u32 %s2, 4
      %s107 = int_to_ptr.hbm [resolvable:$true] %s106
      %109 = dma.smem_to_hbm [#allocation9], 16, %s107, [#allocation6]
    $region29: #{tpu_custom_call.1} parent=1 // pred_fallthru
      _
    // Predicated region
    $region30: #{tpu_custom_call.1} parent=1 // pred_check
      _
    $region31: #{tpu_custom_call.1} parent=1 // pred_check_branch
      %111 = sbr.rel (0) target = $region33
    $region32: #{tpu_custom_call.1} parent=1 // pred_region
      %113 = dma.done [#allocation6], 16
    $region33: #{tpu_custom_call.1} parent=1 // pred_fallthru
      _
    %114 = sfence
    %115 = vsyncpa [#allocation5], 1
    %116 = vsyncpa [#allocation8], 1
    %117 = vsyncpa [#allocation6], 1

</llo_original>
